<compile_context>
chip_gen: v7x
topology: tpu7x:2x2x1
jax: 0.10.0
libtpu: 0.0.40
codegen_flags: <defaults>
</compile_context>

<pallas_src>
import functools

import jax
import jax.numpy as jnp
from jax.experimental import pallas as pl
from jax.experimental.pallas import tpu as pltpu


def _cf_classifier_kernel(x_ref, w_ref, b_ref, out_ref, *, num_C):
    # Cast the streamed x tile to the (bf16) weight dtype on the VPU; the
    # matmul accumulates in f32 on the MXU.
    x = x_ref[...].astype(w_ref.dtype)

    # Single folded matmul for both heads: [TB, D] @ [D, num_C + num_F].
    logits = jnp.dot(x, w_ref[...], preferred_element_type=jnp.float32) + b_ref[...]

    # Segmented softmax over the lane axis: columns [0, num_C) are the coarse
    # head, columns [num_C, num_C+num_F) are the fine head.
    col = jax.lax.broadcasted_iota(jnp.int32, logits.shape, dimension=1)
    is_c = col < num_C
    neg_inf = jnp.float32(-jnp.inf)

    m_c = jnp.max(jnp.where(is_c, logits, neg_inf), axis=-1, keepdims=True)
    m_f = jnp.max(jnp.where(is_c, neg_inf, logits), axis=-1, keepdims=True)
    e = jnp.exp(logits - jnp.where(is_c, m_c, m_f))
    s_c = jnp.sum(jnp.where(is_c, e, 0.0), axis=-1, keepdims=True)
    s_f = jnp.sum(jnp.where(is_c, 0.0, e), axis=-1, keepdims=True)
    denom = jnp.where(is_c, s_c, s_f)

    # Exact reciprocal (EUP): keeps per-row sums at 1 to f32 accuracy; it is
    # as cheap as the approx variant in this HBM-bound kernel.
    out_ref[...] = (e * pl.reciprocal(denom, approx=False)).astype(out_ref.dtype)


def _default_tile_b(B):
    """>=2 grid steps when B allows (v7x dual-TC), <=2048 rows, multiple of 8."""
    if B <= 8:
        return B
    half = -(-B // 2)          # cdiv(B, 2)
    half = -(-half // 8) * 8   # round up to a multiple of 8
    return min(half, 2048)


def cf_classifier_forward(x, params, *, weight_dtype=jnp.bfloat16, tile_b=None):
    """x: [B, in_channels].  params: dict of weights stored as [D_in, D_out]
    (transpose of PyTorch nn.Linear) and biases as [1, D_out]."""
    B, D = x.shape
    num_C = params["w2c"].shape[1]
    num_F = params["w2f"].shape[1]
    n_out = num_C + num_F

    # ---- fold each head's two Linears into one (eval-mode identity Dropout,
    #      no intermediate nonlinearity), then pack both heads lane-wise ----
    w_eff_c = params["w1c"] @ params["w2c"]                     # [D, num_C]
    w_eff_f = params["w1f"] @ params["w2f"]                     # [D, num_F]
    b_eff_c = params["b1c"] @ params["w2c"] + params["b2c"]     # [1, num_C]
    b_eff_f = params["b1f"] @ params["w2f"] + params["b2f"]     # [1, num_F]
    w_eff = jnp.concatenate([w_eff_c, w_eff_f], axis=1).astype(weight_dtype)
    b_eff = jnp.concatenate([b_eff_c, b_eff_f], axis=1).astype(jnp.float32)

    # NOTE: x is intentionally NOT cast here (a wrapper cast is a separate
    # HBM read+write pass).  The kernel casts each streamed tile in VMEM.

    # ---- batch tiling: TB rows per grid step, weights VMEM-resident ----
    if tile_b is None:
        tile_b = _default_tile_b(B)
    if tile_b != B and tile_b % 8 != 0:
        raise ValueError("tile_b must equal B or be a multiple of 8")
    grid = (pl.cdiv(B, tile_b),)

    def tiled(shape):       # streamed over the batch grid axis
        return pl.BlockSpec(shape, lambda i: (i, 0))

    def resident(shape):    # constant block index -> stays in VMEM
        return pl.BlockSpec(shape, lambda i: (0, 0))

    kernel = functools.partial(_cf_classifier_kernel, num_C=num_C)

    cost = pl.CostEstimate(
        flops=2 * B * D * n_out,
        transcendentals=B * n_out,
        bytes_accessed=(x.size * x.dtype.itemsize
                        + B * n_out * 4
                        + w_eff.size * w_eff.dtype.itemsize
                        + b_eff.size * 4),
    )

    probs = pl.pallas_call(
        kernel,
        out_shape=jax.ShapeDtypeStruct((B, n_out), jnp.float32),
        grid=grid,
        in_specs=[
            tiled((tile_b, D)),      # x (streamed)
            resident((D, n_out)),    # folded W_eff (bf16, resident)
            resident((1, n_out)),    # folded b_eff (f32, resident)
        ],
        out_specs=tiled((tile_b, n_out)),
        compiler_params=pltpu.CompilerParams(
            dimension_semantics=("parallel",),
        ),
        cost_estimate=cost,
    )(x, w_eff, b_eff)

    return probs[:, :num_C], probs[:, num_C:]


def init_params(key, in_channels, hidden_channels, num_C_cls, num_F_cls):
    """Deterministic synthetic init; weights stored as [D_in, D_out]."""
    ks = jax.random.split(key, 8)
    s = 0.05
    return {
        "w1c": s * jax.random.normal(ks[0], (in_channels, hidden_channels), jnp.float32),
        "b1c": s * jax.random.normal(ks[1], (1, hidden_channels), jnp.float32),
        "w2c": s * jax.random.normal(ks[2], (hidden_channels, num_C_cls), jnp.float32),
        "b2c": s * jax.random.normal(ks[3], (1, num_C_cls), jnp.float32),
        "w1f": s * jax.random.normal(ks[4], (in_channels, hidden_channels), jnp.float32),
        "b1f": s * jax.random.normal(ks[5], (1, hidden_channels), jnp.float32),
        "w2f": s * jax.random.normal(ks[6], (hidden_channels, num_F_cls), jnp.float32),
        "b2f": s * jax.random.normal(ks[7], (1, num_F_cls), jnp.float32),
    }


def _reference(x, p):
    """Pure-JAX reference of the eval-mode forward pass (unfolded, f32)."""
    lc = (x @ p["w1c"] + p["b1c"]) @ p["w2c"] + p["b2c"]
    lf = (x @ p["w1f"] + p["b1f"]) @ p["w2f"] + p["b2f"]
    return jax.nn.softmax(lc, axis=1), jax.nn.softmax(lf, axis=1)


if __name__ == "__main__":
    # Small shapes consistent with the module (real model: in=160, hid=64).
    B, IN_CH, HID, NUM_C, NUM_F = 8, 32, 16, 12, 6

    key = jax.random.PRNGKey(0)
    kx, kp = jax.random.split(key)
    x = jax.random.normal(kx, (B, IN_CH), jnp.float32)
    params = init_params(kp, IN_CH, HID, NUM_C, NUM_F)

    # --- single-tile path (default tile selection) ---
    out_c, out_f = cf_classifier_forward(x, params)
    jax.block_until_ready((out_c, out_f))
    ref_c, ref_f = _reference(x, params)
    assert out_c.shape == (B, NUM_C) and out_f.shape == (B, NUM_F)
    assert jnp.allclose(out_c, ref_c, atol=5e-3)
    assert jnp.allclose(out_f, ref_f, atol=5e-3)
    assert jnp.allclose(jnp.sum(out_c, axis=1), 1.0, atol=1e-4)
    assert jnp.allclose(jnp.sum(out_f, axis=1), 1.0, atol=1e-4)

    # --- multi-tile path (grid > 1, batch axis "parallel") ---
    B2 = 24
    x2 = jax.random.normal(jax.random.PRNGKey(1), (B2, IN_CH), jnp.float32)
    oc2, of2 = cf_classifier_forward(x2, params, tile_b=8)
    jax.block_until_ready((oc2, of2))
    rc2, rf2 = _reference(x2, params)
    assert jnp.allclose(oc2, rc2, atol=5e-3)
    assert jnp.allclose(of2, rf2, atol=5e-3)

    # --- x already stored as bf16 in HBM (halves the dominant HBM read) ---
    oc3, of3 = cf_classifier_forward(x2.astype(jnp.bfloat16), params, tile_b=8)
    jax.block_until_ready((oc3, of3))
    assert oc3.shape == (B2, NUM_C) and of3.shape == (B2, NUM_F)
    assert jnp.allclose(jnp.sum(oc3, axis=1), 1.0, atol=1e-4)
    assert jnp.allclose(jnp.sum(of3, axis=1), 1.0, atol=1e-4)
    assert jnp.allclose(oc3, rc2, atol=3e-2)
    assert jnp.allclose(of3, rf2, atol=3e-2)

    print("KERNEL_OK")
</pallas_src>

<mosaic_0001>
module attributes {stable_mosaic.version = 11 : i64} {
  func.func @_cf_classifier_kernel(%arg0: i32, %arg1: memref<8x32xf32, #tpu.memory_space<vmem>>, %arg2: memref<32x18xbf16, #tpu.memory_space<vmem>>, %arg3: memref<1x18xf32, #tpu.memory_space<vmem>>, %arg4: memref<8x18xf32, #tpu.memory_space<vmem>>) attributes {dimension_semantics = [#tpu.dimension_semantics<parallel>], iteration_bounds = array<i64: 1>, scalar_prefetch = 0 : i64, scratch_operands = 0 : i64, tpu.core_type = #tpu.core_type<tc>, window_params = [{transform_indices = @transform_0, window_bounds = array<i64: 8, 32>}, {pipeline_mode = #tpu.pipeline_mode<synchronous>, transform_indices = @transform_1, window_bounds = array<i64: 32, 18>}, {pipeline_mode = #tpu.pipeline_mode<synchronous>, transform_indices = @transform_2, window_bounds = array<i64: 1, 18>}, {transform_indices = @transform_3, window_bounds = array<i64: 8, 18>}]} {
    %c0 = arith.constant 0 : index
    %c0_0 = arith.constant 0 : index
    %0 = vector.load %arg1[%c0, %c0_0] : memref<8x32xf32, #tpu.memory_space<vmem>>, vector<8x32xf32>
    %1 = arith.truncf %0 : vector<8x32xf32> to vector<8x32xbf16>
    %c0_1 = arith.constant 0 : index
    %c0_2 = arith.constant 0 : index
    %2 = vector.load %arg2[%c0_1, %c0_2] : memref<32x18xbf16, #tpu.memory_space<vmem>>, vector<32x18xbf16>
    %cst = arith.constant dense<0.000000e+00> : vector<8x18xf32>
    %3 = tpu.matmul %1, %2, %cst {dimension_numbers = #tpu.dot_dimension_numbers<[1], [0], [0], [1], [0, 0, 1, 1], [], []>} : vector<8x32xbf16>, vector<32x18xbf16>, vector<8x18xf32> -> vector<8x18xf32>
    %c0_3 = arith.constant 0 : index
    %c0_4 = arith.constant 0 : index
    %4 = vector.load %arg3[%c0_3, %c0_4] : memref<1x18xf32, #tpu.memory_space<vmem>>, vector<1x18xf32>
    %5 = vector.broadcast %4 : vector<1x18xf32> to vector<8x18xf32>
    %6 = arith.addf %3, %5 : vector<8x18xf32>
    %7 = tpu.iota {dimensions = array<i32: 1>} : vector<8x18xi32>
    %c12_i32 = arith.constant 12 : i32
    %8 = vector.broadcast %c12_i32 : i32 to vector<8x18xi32>
    %9 = arith.cmpi slt, %7, %8 : vector<8x18xi32>
    %cst_5 = arith.constant 0xFF800000 : f32
    %10 = vector.broadcast %cst_5 : f32 to vector<8x18xf32>
    %11 = arith.select %9, %6, %10 : vector<8x18xi1>, vector<8x18xf32>
    %cst_6 = arith.constant dense<0xFF800000> : vector<8xf32>
    %12 = vector.multi_reduction <maximumf>, %11, %cst_6 [1] : vector<8x18xf32> to vector<8xf32>
    %13 = vector.shape_cast %12 : vector<8xf32> to vector<8x1xf32>
    %cst_7 = arith.constant 0xFF800000 : f32
    %14 = vector.broadcast %cst_7 : f32 to vector<8x18xf32>
    %15 = arith.select %9, %14, %6 : vector<8x18xi1>, vector<8x18xf32>
    %cst_8 = arith.constant dense<0xFF800000> : vector<8xf32>
    %16 = vector.multi_reduction <maximumf>, %15, %cst_8 [1] : vector<8x18xf32> to vector<8xf32>
    %17 = vector.shape_cast %16 : vector<8xf32> to vector<8x1xf32>
    %18 = vector.shape_cast %13 : vector<8x1xf32> to vector<8x1xf32>
    %19 = vector.broadcast %18 : vector<8x1xf32> to vector<8x18xf32>
    %20 = vector.shape_cast %17 : vector<8x1xf32> to vector<8x1xf32>
    %21 = vector.broadcast %20 : vector<8x1xf32> to vector<8x18xf32>
    %22 = arith.select %9, %19, %21 : vector<8x18xi1>, vector<8x18xf32>
    %23 = arith.subf %6, %22 : vector<8x18xf32>
    %24 = math.exp %23 : vector<8x18xf32>
    %cst_9 = arith.constant 0.000000e+00 : f32
    %25 = vector.broadcast %cst_9 : f32 to vector<8x18xf32>
    %26 = arith.select %9, %24, %25 : vector<8x18xi1>, vector<8x18xf32>
    %cst_10 = arith.constant dense<0.000000e+00> : vector<8xf32>
    %27 = vector.multi_reduction <add>, %26, %cst_10 [1] : vector<8x18xf32> to vector<8xf32>
    %28 = vector.shape_cast %27 : vector<8xf32> to vector<8x1xf32>
    %cst_11 = arith.constant 0.000000e+00 : f32
    %29 = vector.broadcast %cst_11 : f32 to vector<8x18xf32>
    %30 = arith.select %9, %29, %24 : vector<8x18xi1>, vector<8x18xf32>
    %cst_12 = arith.constant dense<0.000000e+00> : vector<8xf32>
    %31 = vector.multi_reduction <add>, %30, %cst_12 [1] : vector<8x18xf32> to vector<8xf32>
    %32 = vector.shape_cast %31 : vector<8xf32> to vector<8x1xf32>
    %33 = vector.shape_cast %28 : vector<8x1xf32> to vector<8x1xf32>
    %34 = vector.broadcast %33 : vector<8x1xf32> to vector<8x18xf32>
    %35 = vector.shape_cast %32 : vector<8x1xf32> to vector<8x1xf32>
    %36 = vector.broadcast %35 : vector<8x1xf32> to vector<8x18xf32>
    %37 = arith.select %9, %34, %36 : vector<8x18xi1>, vector<8x18xf32>
    %38 = tpu.reciprocal %37 : vector<8x18xf32> -> vector<8x18xf32>
    %39 = arith.mulf %24, %38 : vector<8x18xf32>
    %c0_13 = arith.constant 0 : index
    %c0_14 = arith.constant 0 : index
    %40 = vector.load %arg4[%c0_13, %c0_14] : memref<8x18xf32, #tpu.memory_space<vmem>>, vector<8x18xf32>
    tpu.vector_store %arg4[%c0_13, %c0_14], %39 {strides = array<i32>} : memref<8x18xf32, #tpu.memory_space<vmem>>, vector<8x18xf32>,
    return
  }
  func.func @transform_0(%arg0: i32) -> (i32, i32) {
    %c0_i32 = arith.constant 0 : i32
    %c0_i32_0 = arith.constant 0 : i32
    return %arg0, %c0_i32 : i32, i32
  }
  func.func @transform_1(%arg0: i32) -> (i32, i32) {
    %c0_i32 = arith.constant 0 : i32
    %c0_i32_0 = arith.constant 0 : i32
    %c0_i32_1 = arith.constant 0 : i32
    return %c0_i32, %c0_i32_0 : i32, i32
  }
  func.func @transform_2(%arg0: i32) -> (i32, i32) {
    %c0_i32 = arith.constant 0 : i32
    %c0_i32_0 = arith.constant 0 : i32
    %c0_i32_1 = arith.constant 0 : i32
    return %c0_i32, %c0_i32_0 : i32, i32
  }
  func.func @transform_3(%arg0: i32) -> (i32, i32) {
    %c0_i32 = arith.constant 0 : i32
    %c0_i32_0 = arith.constant 0 : i32
    return %arg0, %c0_i32 : i32, i32
  }
}

</mosaic_0001>

<llo_original>
// kernel: tpu_custom_call.1
$region0: #{tpu_custom_call.1}
  #allocation0 [shape = 'u32[]', space=smem, size = 0x4, offset = 0x4, fixed_abs, tag = 'smem constant byte address 0x4 - core index']
  #allocation1 [shape = 'u32[144,128]{1,0:T(1,128)}', space=vmem, size = 0x12000, scoped, tag = 'internal scratch']
  %s0 = inlined_call_operand.vmem [shape: f32[8,32], index: 0, kind: input, shape index: {}]
  %s1 = inlined_call_operand.vmem [shape: bf16[32,18], index: 1, kind: input, shape index: {}]
  %s2 = inlined_call_operand.vmem [shape: f32[1,18], index: 2, kind: input, shape index: {}]
  %s3 = inlined_call_operand.hbm [shape: f32[8,18], index: 3, kind: output, shape index: {}]
  %s4 = sld [smem:[#allocation0]]
  $region22: #{tpu_custom_call.1} parent=0
    _
  %s6 = ssub.s32 1, %s4
  %s7 = scalar_select 0, %s6, %s4
  $region1: #{tpu_custom_call.1} parent=0
    #allocation2 [shape = 'u8[4096]{0}', space=vmem, size = 0x1000, scoped, tag = 'output window, operand 0, single buffered']
    #allocation3 [shape = 's32[1]{0}', space=sflag, size = 0x4, scoped, tag = 'scoped memory for tpu_custom_call.1']
    %8 = vsyncpa [#allocation3], 0
    // Predicated region
    $region2: #{tpu_custom_call.1} parent=1 // pred_check
      _
    $region3: #{tpu_custom_call.1} parent=1 // pred_check_branch
      %10 = sbr.rel (0) target = $region5
    $region4: #{tpu_custom_call.1} parent=1 // pred_region
      _
    $region5: #{tpu_custom_call.1} parent=1 // pred_fallthru
      _
    // Predicated region
    $region6: #{tpu_custom_call.1} parent=1 // pred_check
      _
    $region7: #{tpu_custom_call.1} parent=1 // pred_check_branch
      %12 = sbr.rel (0) target = $region9
    $region8: #{tpu_custom_call.1} parent=1 // pred_region
      _
    $region9: #{tpu_custom_call.1} parent=1 // pred_fallthru
      _
    // Predicated region
    $region10: #{tpu_custom_call.1} parent=1 // pred_check
      _
    $region11: #{tpu_custom_call.1} parent=1 // pred_check_branch
      %14 = sbr.rel (0) target = $region13
    $region12: #{tpu_custom_call.1} parent=1 // pred_region
      _
    $region13: #{tpu_custom_call.1} parent=1 // pred_fallthru
      _
    %v16 = vld [vmem:[%s0] sm:$0xff]
    %v17 = vpack.c.bf16 %v16, %v16
    %v18 = vld [vmem:[%s1] sm:$0xf]
    %v19 = vld [vmem:[%s1 + $0x4] sm:$0xf]
    %v20 = vld [vmem:[%s1 + $0x8] sm:$0xf]
    %v21 = vld [vmem:[%s1 + $0xc] sm:$0xf]
    %v22 = vld [vmem:[%s2] sm:$0x1]
    %v24 = vlaneseq
    %v25 = vshrl.u32 %v24, 7
    %v26 = vsub.s32 0, %v25
    %v27 = vrot.slane %v22, %v26
    %v33 = vunpack.c.l.b16 %v18
    %v34 = vunpack.c.l.b16 %v19
    %v35 = vunpack.c.l.b16 %v20
    %v36 = vunpack.c.l.b16 %v21
    %v37 = vpack.c.b16 %v34, %v33
    %v38 = vpack.c.b16 %v36, %v35
    %vm41 = vcmask 261120
    %v43 = vsel %vm41, %v17, 0
    %45 = vmatprep.subr.bf16.mxu0 0
    %46 = vmatpush1.bf16.msra.mxu0 %v37
    %47 = vmatprep.subr.bf16.mxu0 0
    %48 = vmatpush1.bf16.msra.mxu0 %v38
    %49 = vmatprep.subr.bf16.mxu0 0
    %50 = vmatpush1.bf16.msra.mxu0 0
    %51 = vmatprep.subr.bf16.mxu0 0
    %52 = vmatpush1.bf16.msra.mxu0 0
    %53 = vmatprep.subr.bf16.mxu0 0
    %54 = vmatpush1.bf16.msra.mxu0 0
    %55 = vmatprep.subr.bf16.mxu0 0
    %56 = vmatpush1.bf16.msra.mxu0 0
    %57 = vmatprep.subr.bf16.mxu0 0
    %58 = vmatpush1.bf16.msra.mxu0 0
    %59 = vmatprep.subr.bf16.mxu0 0
    %60 = vmatpush1.bf16.msra.mxu0 0
    %61 = vmatprep.subr.bf16.mxu0 0
    %62 = vmatpush1.bf16.msra.mxu0 0
    %63 = vmatprep.subr.bf16.mxu0 0
    %64 = vmatpush1.bf16.msra.mxu0 0
    %65 = vmatprep.subr.bf16.mxu0 0
    %66 = vmatpush1.bf16.msra.mxu0 0
    %67 = vmatprep.subr.bf16.mxu0 0
    %68 = vmatpush1.bf16.msra.mxu0 0
    %69 = vmatprep.subr.bf16.mxu0 0
    %70 = vmatpush1.bf16.msra.mxu0 0
    %71 = vmatprep.subr.bf16.mxu0 0
    %72 = vmatpush1.bf16.msra.mxu0 0
    %73 = vmatprep.subr.bf16.mxu0 0
    %74 = vmatpush1.bf16.msra.mxu0 0
    %75 = vmatprep.subr.bf16.mxu0 0
    %76 = vmatpush1.bf16.msra.mxu0 0
    %77 = vmatprep.mubr.bf16.mxu0 0
    %78 = vmatmul.mubr.bf16.gmra.mrb[0].mxu0 %v43
    %v79 = vpop.f32.mrb[0].mxu0
    %v80 = vadd.f32 %v27, %v79
    %v81 = vpop.f32.mrb[0].mxu0
    %v82 = vpop.f32.mrb[0].mxu0
    %v83 = vpop.f32.mrb[0].mxu0
    %84 = vdwg.mxu0
    %v85 = vlaneseq
    %v86 = vand.u32 %v85, 127
    %vm87 = vcmp.lt.s32.totalorder %v86, 12
    %v88 = vsel %vm87, %v80, -inf
    %vm89 = vcmask 146432
    %v90 = vsel %vm89, %v88, -inf
    %91 = vmax.xlane.f32.xlu0 %v90
    %v92 = vpop.xlane.xlu0 %91
    %v93 = vsel %vm87, -inf, %v80
    %v94 = vsel %vm89, %v93, -inf
    %95 = vmax.xlane.f32.xlu0 %v94
    %v96 = vpop.xlane.xlu0 %95
    %v97 = vsel %vm87, %v92, %v96
    %v98 = vsub.f32 %v80, %v97
    %v99 = vmul.f32 %v98, 1.442695
    %v100 = vpow.pop %v99
    %v101 = vsel %vm87, %v100, 0.0
    %v102 = vsel %vm89, %v101, 0.0
    %103 = vadd.xlane.f32.xlu0 %v102
    %v104 = vpop.xlane.xlu0 %103
    %v105 = vsel %vm87, 0.0, %v100
    %v106 = vsel %vm89, %v105, 0.0
    %107 = vadd.xlane.f32.xlu0 %v106
    %v108 = vpop.xlane.xlu0 %107
    %v109 = vsel %vm87, %v104, %v108
    %v110 = vrcp.pop %v109
    %v111 = vmul.f32 %v100, %v110
    %112 = vst.msk [vmem:[#allocation2] sm:$0xff] %vm89, %v111
    // Predicated region
    $region14: #{tpu_custom_call.1} parent=1 // pred_check
      _
    $region15: #{tpu_custom_call.1} parent=1 // pred_check_branch
      %114 = sbr.rel (0) target = $region17
    $region16: #{tpu_custom_call.1} parent=1 // pred_region
      %s116 = ssub.s32 128, 128
      %117 = vsyncadd [#allocation3], %s116
      %s119 = sshll.u32 [#allocation2], 4
      %s120 = int_to_ptr.vmem [resolvable:$true] %s119
      %122 = dma.vmem_to_hbm [thread:$0]  %s120, 128, %s3, [#allocation3]
    $region17: #{tpu_custom_call.1} parent=1 // pred_fallthru
      _
    // Predicated region
    $region18: #{tpu_custom_call.1} parent=1 // pred_check
      _
    $region19: #{tpu_custom_call.1} parent=1 // pred_check_branch
      %124 = sbr.rel (0) target = $region21
    $region20: #{tpu_custom_call.1} parent=1 // pred_region
      %125 = dma.done [#allocation3], 128
    $region21: #{tpu_custom_call.1} parent=1 // pred_fallthru
      _
    %126 = vsyncpa [#allocation3], 1

</llo_original>
